<compile_context>
chip_gen: v5e
topology: v5e:2x2
jax: 0.10.0
libtpu: 0.0.40
codegen_flags: <defaults>
</compile_context>

<pallas_src>
import functools

import jax
import jax.numpy as jnp
from jax.experimental import pallas as pl
from jax.experimental.pallas import tpu as pltpu

_VMEM_BUDGET = 40 << 20      # cap on the double-buffered footprint (v7x headroom)
_VMEM_LIMIT_CAP = 48 << 20   # scoped-VMEM limit handed to Mosaic (< 64 MiB v7x)


def _elem_loss(x, t):
    # Numerically stable BCE-with-logits, elementwise, in f32.
    return jnp.maximum(x, 0.0) - x * t + jnp.log1p(jnp.exp(-jnp.abs(x)))


def _fold(acc_ref, loss, aw):
    """Lane-aligned accumulation of a (Bt, Lt) f32 tile into a (Bt, aw) scratch."""
    lt = loss.shape[-1]
    acc = acc_ref[...]
    for j in range(lt // aw):                       # static, lane-aligned slices
        acc = acc + loss[:, j * aw:(j + 1) * aw]
    acc_ref[...] = acc
    return acc


def _accumulate_and_finish(o_ref, acc_ref, loss, *, L, lt, aw):
    k = pl.program_id(1)
    last = pl.num_programs(1) - 1

    @pl.when(k == 0)
    def _():
        acc_ref[...] = jnp.zeros_like(acc_ref)

    @pl.when(k != last)
    def _():
        _fold(acc_ref, loss, aw)

    @pl.when(k == last)
    def _():
        masked = loss
        if L % lt != 0:
            # Tail tile on L only: zero lanes past the true length.  Contents
            # of the tail block are undefined, so jnp.where (not multiply) is
            # required to discard any NaN/Inf produced from garbage lanes.
            col = (L // lt) * lt + jax.lax.broadcasted_iota(jnp.int32, (1, lt), 1)
            masked = jnp.where(col < L, loss, 0.0)
        acc = _fold(acc_ref, masked, aw)
        total = jnp.sum(acc, axis=-1, keepdims=True)     # single XLU reduce
        o_ref[...] = (total * jnp.float32(1.0 / L)).astype(o_ref.dtype)


def _bce_kernel(x_ref, t_ref, o_ref, acc_ref, *, L, lt, aw):
    x = x_ref[...].astype(jnp.float32)
    t = t_ref[...].astype(jnp.float32)
    loss = _elem_loss(x, t)
    _accumulate_and_finish(o_ref, acc_ref, loss, L=L, lt=lt, aw=aw)


def _bce_masked_kernel(x_ref, t_ref, m_ref, o_ref, acc_ref, *, L, lt, aw):
    x = x_ref[...].astype(jnp.float32)
    t = t_ref[...].astype(jnp.float32)
    w = m_ref[...].astype(jnp.float32)   # int8/bf16/f32 weight stream, f32 math
    loss = _elem_loss(x, t) * w
    _accumulate_and_finish(o_ref, acc_ref, loss, L=L, lt=lt, aw=aw)


def _round_up(x, m):
    return ((x + m - 1) // m) * m


def _pallas_bce(inputs, target, mask, bt, lt):
    B, L = inputs.shape

    # Batch tile: keep >= 2 blocks on the "parallel" axis when possible so both
    # v7x TensorCores get work (no effect on 1-TC v5e/v6e).
    if B <= 8:
        bt_eff = B                                        # full extent
    elif B <= bt:
        bt_eff = max(8, _round_up(pl.cdiv(B, 2), 8))      # >= 2 batch blocks
    else:
        bt_eff = max(8, (bt // 8) * 8)

    # Length tile: full extent or a multiple of 128 lanes.
    lt_eff = L if L <= lt else max(128, (lt // 128) * 128)

    def footprint(bte, lte):
        b = 2 * bte * lte * inputs.dtype.itemsize
        b += 2 * bte * lte * target.dtype.itemsize
        if mask is not None:
            b += 2 * bte * lte * mask.dtype.itemsize
        b += bte * 128 * 4 + 2 * bte * 4   # acc scratch + (Bt,1) out buffers
        return b

    # Cap the double-buffered footprint (headroom on v7x's 64 MiB VMEM/TC).
    while footprint(bt_eff, lt_eff) > _VMEM_BUDGET:
        if lt_eff % 128 == 0 and lt_eff > 128:
            lt_eff = max(128, ((lt_eff // 2) // 128) * 128)
        elif bt_eff % 8 == 0 and bt_eff > 8:
            bt_eff = max(8, ((bt_eff // 2) // 8) * 8)
        else:
            break

    aw = 128 if lt_eff % 128 == 0 else lt_eff
    grid = (pl.cdiv(B, bt_eff), pl.cdiv(L, lt_eff))
    vmem_limit = int(min(max(footprint(bt_eff, lt_eff) + (8 << 20), 32 << 20),
                         _VMEM_LIMIT_CAP))

    in_spec = pl.BlockSpec((bt_eff, lt_eff), lambda i, k: (i, k))
    # Output block constant along the L grid axis -> resident, written once.
    out_spec = pl.BlockSpec((bt_eff, 1), lambda i, k: (i, 0))

    if mask is None:
        kernel = functools.partial(_bce_kernel, L=L, lt=lt_eff, aw=aw)
        in_specs = [in_spec, in_spec]
        operands = (inputs, target)
    else:
        kernel = functools.partial(_bce_masked_kernel, L=L, lt=lt_eff, aw=aw)
        in_specs = [in_spec, in_spec, in_spec]
        operands = (inputs, target, mask)

    out = pl.pallas_call(
        kernel,
        out_shape=jax.ShapeDtypeStruct((B, 1), jnp.float32),
        grid_spec=pltpu.PrefetchScalarGridSpec(
            num_scalar_prefetch=0,
            grid=grid,
            in_specs=in_specs,
            out_specs=out_spec,
            scratch_shapes=[pltpu.VMEM((bt_eff, aw), jnp.float32)],
        ),
        compiler_params=pltpu.CompilerParams(
            dimension_semantics=("parallel", "arbitrary"),
            vmem_limit_bytes=vmem_limit,
        ),
    )(*operands)
    return out[:, 0]


def sigmoid_bce_loss(inputs, target, mask=None, *, bt=512, lt=2048,
                     use_pallas=None):
    """inputs/target/mask: [B, L] (f32/bf16; mask may be int/bool) -> [B] f32."""
    B, L = inputs.shape
    if use_pallas is None:
        # Small problems: fused jnp beats pallas_call dispatch + grid overhead.
        use_pallas = (B * L) >= (1 << 20)
    if not use_pallas:
        return _reference(inputs, target, mask)
    if mask is not None and mask.dtype == jnp.bool_:
        mask = mask.astype(jnp.int8)   # 1 B/elem mask stream (vs 4 B for f32)
    return _pallas_bce(inputs, target, mask, bt, lt)


def _reference(inputs, target, mask=None):
    x = inputs.astype(jnp.float32)
    t = target.astype(jnp.float32)
    loss = _elem_loss(x, t)
    if mask is not None:
        loss = loss * mask.astype(jnp.float32)
    return jnp.mean(loss, axis=1)


if __name__ == "__main__":
    key = jax.random.PRNGKey(0)
    k1, k2, k3 = jax.random.split(key, 3)

    # Small shapes consistent with the module: [batch_size, max_len].
    B, L = 20, 320
    inputs = jax.random.normal(k1, (B, L), dtype=jnp.float32) * 2.0
    target = (jax.random.uniform(k2, (B, L)) > 0.5).astype(jnp.float32)
    mask = (jax.random.uniform(k3, (B, L)) > 0.25).astype(jnp.float32)

    # 1) Masked f32, multi-tile: bt_eff=16 (2 parallel batch blocks, B tail),
    #    lt_eff=128 (3 L steps, tail of 64 masked only on the last tile).
    out = sigmoid_bce_loss(inputs, target, mask, lt=128, use_pallas=True)
    out = jax.block_until_ready(out)
    ref = _reference(inputs, target, mask)
    assert out.shape == (B,)
    assert jnp.allclose(out, ref, atol=1e-5, rtol=1e-5)

    # 2) Unmasked variant (two-input kernel, no mask stream).
    out_nm = sigmoid_bce_loss(inputs, target, None, lt=128, use_pallas=True)
    out_nm = jax.block_until_ready(out_nm)
    assert jnp.allclose(out_nm, _reference(inputs, target, None),
                        atol=1e-5, rtol=1e-5)

    # 3) bf16 inputs/mask (half the HBM traffic); compute still f32 in-kernel.
    out_bf = sigmoid_bce_loss(inputs.astype(jnp.bfloat16),
                              target.astype(jnp.bfloat16),
                              mask.astype(jnp.bfloat16),
                              bt=16, lt=128, use_pallas=True)
    out_bf = jax.block_until_ready(out_bf)
    ref_bf = _reference(inputs.astype(jnp.bfloat16),
                        target.astype(jnp.bfloat16),
                        mask.astype(jnp.bfloat16))
    assert jnp.allclose(out_bf, ref_bf, atol=1e-4, rtol=1e-4)

    # 4) bool mask -> int8 stream (quarter the mask traffic), 2 batch blocks.
    kb1, kb2, kb3 = jax.random.split(jax.random.PRNGKey(1), 3)
    xb = jax.random.normal(kb1, (64, 256), dtype=jnp.float32)
    tb = (jax.random.uniform(kb2, (64, 256)) > 0.5).astype(jnp.float32)
    mb = jax.random.uniform(kb3, (64, 256)) > 0.25          # bool mask
    out_b = sigmoid_bce_loss(xb, tb, mb, use_pallas=True)
    out_b = jax.block_until_ready(out_b)
    assert jnp.allclose(out_b, _reference(xb, tb, mb), atol=1e-5, rtol=1e-5)

    # 5) Default big-tile config (Lt=2048) with an L tail, two batch blocks.
    kc1, kc2, kc3 = jax.random.split(jax.random.PRNGKey(2), 3)
    xc = jax.random.normal(kc1, (48, 2304), dtype=jnp.float32)
    tc = (jax.random.uniform(kc2, (48, 2304)) > 0.5).astype(jnp.float32)
    mc = (jax.random.uniform(kc3, (48, 2304)) > 0.25).astype(jnp.float32)
    out_c = sigmoid_bce_loss(xc, tc, mc, use_pallas=True)
    out_c = jax.block_until_ready(out_c)
    assert jnp.allclose(out_c, _reference(xc, tc, mc), atol=1e-5, rtol=1e-5)

    # 6) Docstring example from the PyTorch module.
    pred = jnp.array([[1.1, -2.2, 3.3, -4.4]] * 2, dtype=jnp.float32)
    label = jnp.array([[1.0, 0.0, 0.0, 0.0],
                       [0.0, 1.0, 0.0, 0.0]], dtype=jnp.float32)
    msk = jnp.array([[1, 1, 1, 1],
                     [1, 1, 0, 0]], dtype=jnp.float32)
    l = sigmoid_bce_loss(pred, label, msk, use_pallas=True)
    l = l * msk.shape[1] / msk.sum(axis=1)
    l = jax.block_until_ready(l)
    assert jnp.allclose(l, jnp.array([0.9352, 1.8462]), atol=1e-3)

    print("KERNEL_OK")
</pallas_src>

<mosaic_0001>
module attributes {stable_mosaic.version = 11 : i64} {
  func.func @_bce_masked_kernel(%arg0: i32, %arg1: i32, %arg2: memref<16x128xf32, #tpu.memory_space<vmem>>, %arg3: memref<16x128xf32, #tpu.memory_space<vmem>>, %arg4: memref<16x128xf32, #tpu.memory_space<vmem>>, %arg5: memref<16x1xf32, #tpu.memory_space<vmem>>, %arg6: memref<16x128xf32, #tpu.memory_space<vmem>>) attributes {dimension_semantics = [#tpu.dimension_semantics<parallel>, #tpu.dimension_semantics<arbitrary>], iteration_bounds = array<i64: 2, 3>, scalar_prefetch = 0 : i64, scratch_operands = 1 : i64, tpu.core_type = #tpu.core_type<tc>, window_params = [{transform_indices = @transform_0, window_bounds = array<i64: 16, 128>}, {transform_indices = @transform_1, window_bounds = array<i64: 16, 128>}, {transform_indices = @transform_2, window_bounds = array<i64: 16, 128>}, {transform_indices = @transform_3, window_bounds = array<i64: 16, 1>}]} {
    %c0 = arith.constant 0 : index
    %c0_0 = arith.constant 0 : index
    %0 = vector.load %arg2[%c0, %c0_0] : memref<16x128xf32, #tpu.memory_space<vmem>>, vector<16x128xf32>
    %c0_1 = arith.constant 0 : index
    %c0_2 = arith.constant 0 : index
    %1 = vector.load %arg3[%c0_1, %c0_2] : memref<16x128xf32, #tpu.memory_space<vmem>>, vector<16x128xf32>
    %c0_3 = arith.constant 0 : index
    %c0_4 = arith.constant 0 : index
    %2 = vector.load %arg4[%c0_3, %c0_4] : memref<16x128xf32, #tpu.memory_space<vmem>>, vector<16x128xf32>
    %cst = arith.constant 0.000000e+00 : f32
    %3 = vector.broadcast %cst : f32 to vector<16x128xf32>
    %4 = arith.maximumf %0, %3 : vector<16x128xf32>
    %5 = arith.mulf %0, %1 : vector<16x128xf32>
    %6 = arith.subf %4, %5 : vector<16x128xf32>
    %7 = math.absf %0 : vector<16x128xf32>
    %cst_5 = arith.constant 0.000000e+00 : f32
    %8 = vector.broadcast %cst_5 : f32 to vector<16x128xf32>
    %9 = arith.subf %8, %7 : vector<16x128xf32>
    %10 = math.exp %9 : vector<16x128xf32>
    %11 = math.log1p %10 : vector<16x128xf32>
    %12 = arith.addf %6, %11 : vector<16x128xf32>
    %13 = arith.mulf %12, %2 : vector<16x128xf32>
    %c0_i32 = arith.constant 0 : i32
    %14 = arith.cmpi eq, %arg1, %c0_i32 : i32
    %15 = arith.extui %14 : i1 to i32
    %c0_i32_6 = arith.constant 0 : i32
    %16 = arith.cmpi ne, %15, %c0_i32_6 : i32
    scf.if %16 {
      %cst_10 = arith.constant 0.000000e+00 : f32
      %23 = vector.broadcast %cst_10 : f32 to vector<16x128xf32>
      %c0_11 = arith.constant 0 : index
      %c0_12 = arith.constant 0 : index
      %24 = vector.load %arg6[%c0_11, %c0_12] : memref<16x128xf32, #tpu.memory_space<vmem>>, vector<16x128xf32>
      tpu.vector_store %arg6[%c0_11, %c0_12], %23 {strides = array<i32>} : memref<16x128xf32, #tpu.memory_space<vmem>>, vector<16x128xf32>,
    } else {
    }
    %c2_i32 = arith.constant 2 : i32
    %17 = arith.cmpi ne, %arg1, %c2_i32 : i32
    %18 = arith.extui %17 : i1 to i32
    %c0_i32_7 = arith.constant 0 : i32
    %19 = arith.cmpi ne, %18, %c0_i32_7 : i32
    scf.if %19 {
      %c0_10 = arith.constant 0 : index
      %c0_11 = arith.constant 0 : index
      %23 = vector.load %arg6[%c0_10, %c0_11] : memref<16x128xf32, #tpu.memory_space<vmem>>, vector<16x128xf32>
      %24 = arith.addf %23, %13 : vector<16x128xf32>
      %c0_12 = arith.constant 0 : index
      %c0_13 = arith.constant 0 : index
      %25 = vector.load %arg6[%c0_12, %c0_13] : memref<16x128xf32, #tpu.memory_space<vmem>>, vector<16x128xf32>
      tpu.vector_store %arg6[%c0_12, %c0_13], %24 {strides = array<i32>} : memref<16x128xf32, #tpu.memory_space<vmem>>, vector<16x128xf32>,
    } else {
    }
    %c2_i32_8 = arith.constant 2 : i32
    %20 = arith.cmpi eq, %arg1, %c2_i32_8 : i32
    %21 = arith.extui %20 : i1 to i32
    %c0_i32_9 = arith.constant 0 : i32
    %22 = arith.cmpi ne, %21, %c0_i32_9 : i32
    scf.if %22 {
      %23 = tpu.iota {dimensions = array<i32: 1>} : vector<1x128xi32>
      %c256_i32 = arith.constant 256 : i32
      %24 = vector.broadcast %c256_i32 : i32 to vector<1x128xi32>
      %25 = arith.addi %24, %23 : vector<1x128xi32>
      %c320_i32 = arith.constant 320 : i32
      %26 = vector.broadcast %c320_i32 : i32 to vector<1x128xi32>
      %27 = arith.cmpi slt, %25, %26 : vector<1x128xi32>
      %cst_10 = arith.constant 0.000000e+00 : f32
      %28 = vector.shape_cast %27 : vector<1x128xi1> to vector<1x128xi1>
      %29 = vector.broadcast %28 : vector<1x128xi1> to vector<16x128xi1>
      %30 = vector.broadcast %cst_10 : f32 to vector<16x128xf32>
      %31 = arith.select %29, %13, %30 : vector<16x128xi1>, vector<16x128xf32>
      %c0_11 = arith.constant 0 : index
      %c0_12 = arith.constant 0 : index
      %32 = vector.load %arg6[%c0_11, %c0_12] : memref<16x128xf32, #tpu.memory_space<vmem>>, vector<16x128xf32>
      %33 = arith.addf %32, %31 : vector<16x128xf32>
      %c0_13 = arith.constant 0 : index
      %c0_14 = arith.constant 0 : index
      %34 = vector.load %arg6[%c0_13, %c0_14] : memref<16x128xf32, #tpu.memory_space<vmem>>, vector<16x128xf32>
      tpu.vector_store %arg6[%c0_13, %c0_14], %33 {strides = array<i32>} : memref<16x128xf32, #tpu.memory_space<vmem>>, vector<16x128xf32>,
      %cst_15 = arith.constant dense<0.000000e+00> : vector<16xf32>
      %35 = vector.multi_reduction <add>, %33, %cst_15 [1] : vector<16x128xf32> to vector<16xf32>
      %36 = vector.shape_cast %35 : vector<16xf32> to vector<16x1xf32>
      %cst_16 = arith.constant 3.125000e-03 : f32
      %37 = vector.broadcast %cst_16 : f32 to vector<16x1xf32>
      %38 = arith.mulf %36, %37 : vector<16x1xf32>
      %c0_17 = arith.constant 0 : index
      %c0_18 = arith.constant 0 : index
      %39 = vector.load %arg5[%c0_17, %c0_18] : memref<16x1xf32, #tpu.memory_space<vmem>>, vector<16x1xf32>
      tpu.vector_store %arg5[%c0_17, %c0_18], %38 {strides = array<i32>} : memref<16x1xf32, #tpu.memory_space<vmem>>, vector<16x1xf32>,
    } else {
    }
    return
  }
  func.func @transform_0(%arg0: i32, %arg1: i32) -> (i32, i32) {
    %c0_i32 = arith.constant 0 : i32
    return %arg0, %arg1 : i32, i32
  }
  func.func @transform_1(%arg0: i32, %arg1: i32) -> (i32, i32) {
    %c0_i32 = arith.constant 0 : i32
    return %arg0, %arg1 : i32, i32
  }
  func.func @transform_2(%arg0: i32, %arg1: i32) -> (i32, i32) {
    %c0_i32 = arith.constant 0 : i32
    return %arg0, %arg1 : i32, i32
  }
  func.func @transform_3(%arg0: i32, %arg1: i32) -> (i32, i32) {
    %c0_i32 = arith.constant 0 : i32
    %c0_i32_0 = arith.constant 0 : i32
    return %arg0, %c0_i32 : i32, i32
  }
}

</mosaic_0001>

<llo_original>
// kernel: tpu_custom_call.1
$region0: #{tpu_custom_call.1}
  #allocation0 [shape = 'u32[]', space=smem, size = 0x4, offset = 0x4, fixed_abs, tag = 'smem constant byte address 0x4 - core index']
  #allocation1 [shape = 'u32[72,128]{1,0:T(1,128)}', space=vmem, size = 0x9000, scoped, tag = 'internal scratch']
  #allocation2 [shape = 'f32[16,128]{1,0:T(8,128)}', space=vmem, size = 0x2000, scoped, tag = 'scratch operand']
  %s0 = inlined_call_operand.hbm [shape: f32[20,320], index: 0, kind: input, shape index: {}]
  %s1 = inlined_call_operand.hbm [shape: f32[20,320], index: 1, kind: input, shape index: {}]
  %s2 = inlined_call_operand.hbm [shape: f32[20,320], index: 2, kind: input, shape index: {}]
  %s3 = inlined_call_operand.vmem [shape: f32[20,1], index: 3, kind: output, shape index: {}]
  %s4 = sld [smem:[#allocation0]]
  $region117: #{tpu_custom_call.1} parent=0
    _
  %s6 = ssub.s32 1, %s4
  %s7 = scalar_select 0, %s6, %s4
  $region1: #{tpu_custom_call.1} parent=0
    #allocation3 [shape = 'u8[16384]{0}', space=vmem, size = 0x4000, scoped, tag = 'input window, operand 0']
    #allocation4 [shape = 's32[2]{0}', space=sflag, size = 0x8, scoped, tag = 'scoped memory for tpu_custom_call.1']
    #allocation5 [shape = 'u8[16384]{0}', space=vmem, size = 0x4000, scoped, tag = 'input window, operand 1']
    #allocation6 [shape = 's32[2]{0}', space=sflag, size = 0x8, scoped, tag = 'scoped memory for tpu_custom_call.1']
    #allocation7 [shape = 'u8[16384]{0}', space=vmem, size = 0x4000, scoped, tag = 'input window, operand 2']
    #allocation8 [shape = 'u8[16384]{0}', space=vmem, size = 0x4000, scoped, tag = 'output window, operand 0']
    %8 = vsyncpa [#allocation4], 0
    %s9 = scalar_lea.sflag [#allocation4], 1
    %10 = vsyncpa %s9, 0
    %11 = vsyncpa [#allocation6], 0
    %s12 = scalar_lea.sflag [#allocation6], 1
    %13 = vsyncpa %s12, 0
    loop: start=0, step=1, limit=8
    $region2: #{tpu_custom_call.1} parent=1 // loop_pre_header
      _
    $region3: #{tpu_custom_call.1} parent=1 // loop_header
      %s15 = sphi 0, %s19
      %p16 = scmp.ge.s32.totalorder %s15, 8
      %s22 = sphi 0, %s34
      %s23 = sphi 0, %s30
      %s24 = sphi 0, %s22
      %s25 = sphi 0, %s23
      %s26 = sphi 0, %s24
      %s27 = sphi 0, %s25
      %s39 = sphi 0, %s41
      %s42 = sphi 0, %s39
      %s43 = sphi 0, %s42
      %s59 = sphi 0, %s43
      %s67 = sphi 0, %s69
      %s70 = sphi 0, %s67
      %s71 = sphi 0, %s70
      %s87 = sphi 0, %s71
      %s95 = sphi 0, %s97
      %s98 = sphi 0, %s95
      %s99 = sphi 0, %s98
      %s115 = sphi 0, %s99
      %s121 = sphi 0, %s123
      %s124 = sphi 0, %s121
      %s125 = sphi 0, %s124
      %s141 = sphi 0, %s125
    $region4: #{tpu_custom_call.1} parent=1 // loop_header_branch
      %18 = sbr.rel (%p16) target = $region8
    $region5: #{tpu_custom_call.1} parent=1 // loop_body
      %s20 = ssub.s32 %s15, 1
      %s21 = ssub.s32 %s15, 2
      %s28 = sadd.s32 1, %s23
      %p29 = scmp.ge.s32.totalorder %s28, 3
      %s30 = scalar_select %p29, 0, %s28
      %s31 = sadd.s32 1, %s22
      %s32 = scalar_select %p29, %s31, %s22
      %p33 = scmp.ge.s32.totalorder %s32, 2
      %s34 = scalar_select %p33, 0, %s32
      %s35 = ssub.s32 %s22, %s34
      %s36 = ssub.s32 %s23, %s30
      %s37 = sor.u32 %s35, %s36
      %p38 = scmp.eq.s32.totalorder %s37, 0
      %s40 = sadd.s32 %s39, 1
      %s41 = scalar_select %p38, %s39, %s40
      %p44 = pneg %p38
      %p45 = scmp.eq.s32.totalorder %s15, 5
      %p46 = por %p44, %p45
      %p47 = scmp.ne.s32.totalorder %s39, %s42
      %p48 = scmp.eq.s32.totalorder %s15, 0
      %p49 = por %p47, %p48
      %p50 = scmp.ne.s32.totalorder %s39, %s42
      %p51 = scmp.eq.s32.totalorder %s20, 5
      %p52 = por %p50, %p51
      %p53 = scmp.ne.s32.totalorder %s42, %s43
      %p54 = scmp.eq.s32.totalorder %s20, 0
      %p55 = por %p53, %p54
      %p56 = scmp.ne.s32.totalorder %s42, %s43
      %p57 = scmp.eq.s32.totalorder %s21, 5
      %p58 = por %p56, %p57
      %p60 = scmp.ne.s32.totalorder %s43, %s59
      %p61 = scmp.eq.s32.totalorder %s21, 0
      %p62 = por %p60, %p61
      %s63 = ssub.s32 %s22, %s34
      %s64 = ssub.s32 %s23, %s30
      %s65 = sor.u32 %s63, %s64
      %p66 = scmp.eq.s32.totalorder %s65, 0
      %s68 = sadd.s32 %s67, 1
      %s69 = scalar_select %p66, %s67, %s68
      %p72 = pneg %p66
      %p73 = scmp.eq.s32.totalorder %s15, 5
      %p74 = por %p72, %p73
      %p75 = scmp.ne.s32.totalorder %s67, %s70
      %p76 = scmp.eq.s32.totalorder %s15, 0
      %p77 = por %p75, %p76
      %p78 = scmp.ne.s32.totalorder %s67, %s70
      %p79 = scmp.eq.s32.totalorder %s20, 5
      %p80 = por %p78, %p79
      %p81 = scmp.ne.s32.totalorder %s70, %s71
      %p82 = scmp.eq.s32.totalorder %s20, 0
      %p83 = por %p81, %p82
      %p84 = scmp.ne.s32.totalorder %s70, %s71
      %p85 = scmp.eq.s32.totalorder %s21, 5
      %p86 = por %p84, %p85
      %p88 = scmp.ne.s32.totalorder %s71, %s87
      %p89 = scmp.eq.s32.totalorder %s21, 0
      %p90 = por %p88, %p89
      %s91 = ssub.s32 %s22, %s34
      %s92 = ssub.s32 %s23, %s30
      %s93 = sor.u32 %s91, %s92
      %p94 = scmp.eq.s32.totalorder %s93, 0
      %s96 = sadd.s32 %s95, 1
      %s97 = scalar_select %p94, %s95, %s96
      %p100 = pneg %p94
      %p101 = scmp.eq.s32.totalorder %s15, 5
      %p102 = por %p100, %p101
      %p103 = scmp.ne.s32.totalorder %s95, %s98
      %p104 = scmp.eq.s32.totalorder %s15, 0
      %p105 = por %p103, %p104
      %p106 = scmp.ne.s32.totalorder %s95, %s98
      %p107 = scmp.eq.s32.totalorder %s20, 5
      %p108 = por %p106, %p107
      %p109 = scmp.ne.s32.totalorder %s98, %s99
      %p110 = scmp.eq.s32.totalorder %s20, 0
      %p111 = por %p109, %p110
      %p112 = scmp.ne.s32.totalorder %s98, %s99
      %p113 = scmp.eq.s32.totalorder %s21, 5
      %p114 = por %p112, %p113
      %p116 = scmp.ne.s32.totalorder %s99, %s115
      %p117 = scmp.eq.s32.totalorder %s21, 0
      %p118 = por %p116, %p117
      %s119 = ssub.s32 %s22, %s34
      %p120 = scmp.eq.s32.totalorder %s119, 0
      %s122 = sadd.s32 %s121, 1
      %s123 = scalar_select %p120, %s121, %s122
      %p126 = pneg %p120
      %p127 = scmp.eq.s32.totalorder %s15, 5
      %p128 = por %p126, %p127
      %p129 = scmp.ne.s32.totalorder %s121, %s124
      %p130 = scmp.eq.s32.totalorder %s15, 0
      %p131 = por %p129, %p130
      %p132 = scmp.ne.s32.totalorder %s121, %s124
      %p133 = scmp.eq.s32.totalorder %s20, 5
      %p134 = por %p132, %p133
      %p135 = scmp.ne.s32.totalorder %s124, %s125
      %p136 = scmp.eq.s32.totalorder %s20, 0
      %p137 = por %p135, %p136
      %p138 = scmp.ne.s32.totalorder %s124, %s125
      %p139 = scmp.eq.s32.totalorder %s21, 5
      %p140 = por %p138, %p139
      %p142 = scmp.ne.s32.totalorder %s125, %s141
      %p143 = scmp.eq.s32.totalorder %s21, 0
      %p144 = por %p142, %p143
      %p145 = scmp.le.s32.totalorder 1, %s15
      %p146 = scmp.lt.s32.totalorder %s15, 7
      %p147 = pnand %p145, %p146
      %p148 = pneg %p147
      // Predicated region
      $region9: #{tpu_custom_call.1} parent=5 // pred_check
        _
      $region10: #{tpu_custom_call.1} parent=5 // pred_check_branch
        %150 = sbr.rel (%p147) target = $region12
      $region11: #{tpu_custom_call.1} parent=5 // pred_region
        %s151 = ssub.s32 %s15, 1
      $region12: #{tpu_custom_call.1} parent=5 // pred_fallthru
        _
      %p152 = scmp.lt.s32.totalorder %s15, 6
      // Predicated region
      $region13: #{tpu_custom_call.1} parent=5 // pred_check
        %p153 = pneg %p152
      $region14: #{tpu_custom_call.1} parent=5 // pred_check_branch
        %155 = sbr.rel (%p153) target = $region16
      $region15: #{tpu_custom_call.1} parent=5 // pred_region
        // Predicated region
        $region17: #{tpu_custom_call.1} parent=15 // pred_check
          %p156 = pneg %p49
        $region18: #{tpu_custom_call.1} parent=15 // pred_check_branch
          %158 = sbr.rel (%p156) target = $region20
        $region19: #{tpu_custom_call.1} parent=15 // pred_region
          %s159 = sand.u32 %s39, 1
          %s160 = scalar_lea.sflag [#allocation4], %s159
          %s161 = sand.u32 %s39, 1
          %s162 = smul.addr %s161, 16
          %s163 = scalar_lea.vmem [#allocation3], %s162
          %s164 = smul.u32 2, %s22
          %s165 = ssub.s32 3, %s164
          %p166 = scmp.lt.s32.totalorder %s165, 2
          %s167 = scalar_select %p166, %s165, 2
          %s168 = smul.u32 8, %s167
          %s169 = ssub.s32 16, %s168
          %s170 = sshll.u32 %s169, 4
          %171 = vsyncadd %s160, %s170
          %p172 = scmp.ne.s32.totalorder 0, %s168
          %s173 = smul.addr %s164, 3
          %s174 = sadd.s32 %s23, %s173
          %s175 = smul.addr %s174, 8
          %s176 = scalar_lea.hbm %s0, %s175
          %s177 = smul.u32 8, %s167
          %s178 = sshll.u32 %s176, 4
          %s179 = int_to_ptr.hbm [resolvable:$true] %s178
          %s180 = sshll.u32 %s163, 4
          %s181 = int_to_ptr.vmem [resolvable:$true] %s180
          %s182 = sshll.u32 %s177, 4
          %186 = dma.hbm_to_vmem [thread:$0]  (%p172), %s179, %s182, %s181, %s160, 384, 128, 8
        $region20: #{tpu_custom_call.1} parent=15 // pred_fallthru
          _
        // Predicated region
        $region21: #{tpu_custom_call.1} parent=15 // pred_check
          %p187 = pneg %p77
        $region22: #{tpu_custom_call.1} parent=15 // pred_check_branch
          %189 = sbr.rel (%p187) target = $region24
        $region23: #{tpu_custom_call.1} parent=15 // pred_region
          %s190 = sand.u32 %s15, 1
          %s191 = scalar_lea.sflag [#allocation6], %s190
          %s192 = sand.u32 %s67, 1
          %s193 = smul.addr %s192, 16
          %s194 = scalar_lea.vmem [#allocation5], %s193
          %s195 = smul.u32 2, %s22
          %s196 = ssub.s32 3, %s195
          %p197 = scmp.lt.s32.totalorder %s196, 2
          %s198 = scalar_select %p197, %s196, 2
          %s199 = smul.u32 8, %s198
          %s200 = ssub.s32 16, %s199
          %s201 = sshll.u32 %s200, 4
          %202 = vsyncadd %s191, %s201
          %p203 = scmp.ne.s32.totalorder 0, %s199
          %s204 = smul.addr %s195, 3
          %s205 = sadd.s32 %s23, %s204
          %s206 = smul.addr %s205, 8
          %s207 = scalar_lea.hbm %s1, %s206
          %s208 = smul.u32 8, %s198
          %s209 = sshll.u32 %s207, 4
          %s210 = int_to_ptr.hbm [resolvable:$true] %s209
          %s211 = sshll.u32 %s194, 4
          %s212 = int_to_ptr.vmem [resolvable:$true] %s211
          %s213 = sshll.u32 %s208, 4
          %217 = dma.hbm_to_vmem [thread:$0]  (%p203), %s210, %s213, %s212, %s191, 384, 128, 8
        $region24: #{tpu_custom_call.1} parent=15 // pred_fallthru
          _
        // Predicated region
        $region25: #{tpu_custom_call.1} parent=15 // pred_check
          %p218 = pneg %p105
        $region26: #{tpu_custom_call.1} parent=15 // pred_check_branch
          %220 = sbr.rel (%p218) target = $region28
        $region27: #{tpu_custom_call.1} parent=15 // pred_region
          %s221 = sand.u32 %s15, 1
          %s222 = scalar_lea.sflag [#allocation6], %s221
          %s223 = sand.u32 %s95, 1
          %s224 = smul.addr %s223, 16
          %s225 = scalar_lea.vmem [#allocation7], %s224
          %s226 = smul.u32 2, %s22
          %s227 = ssub.s32 3, %s226
          %p228 = scmp.lt.s32.totalorder %s227, 2
          %s229 = scalar_select %p228, %s227, 2
          %s230 = smul.u32 8, %s229
          %s231 = ssub.s32 16, %s230
          %s232 = sshll.u32 %s231, 4
          %233 = vsyncadd %s222, %s232
          %p234 = scmp.ne.s32.totalorder 0, %s230
          %s235 = smul.addr %s226, 3
          %s236 = sadd.s32 %s23, %s235
          %s237 = smul.addr %s236, 8
          %s238 = scalar_lea.hbm %s2, %s237
          %s239 = smul.u32 8, %s229
          %s240 = sshll.u32 %s238, 4
          %s241 = int_to_ptr.hbm [resolvable:$true] %s240
          %s242 = sshll.u32 %s225, 4
          %s243 = int_to_ptr.vmem [resolvable:$true] %s242
          %s244 = sshll.u32 %s239, 4
          %248 = dma.hbm_to_vmem [thread:$0]  (%p234), %s241, %s244, %s243, %s222, 384, 128, 8
        $region28: #{tpu_custom_call.1} parent=15 // pred_fallthru
          _
      $region16: #{tpu_custom_call.1} parent=5 // pred_fallthru
        _
      %p249 = scmp.le.s32.totalorder 1, %s15
      %p250 = scmp.lt.s32.totalorder %s15, 7
      %p251 = pnand %p249, %p250
      %p252 = pneg %p251
      // Predicated region
      $region29: #{tpu_custom_call.1} parent=5 // pred_check
        _
      $region30: #{tpu_custom_call.1} parent=5 // pred_check_branch
        %254 = sbr.rel (%p251) target = $region32
      $region31: #{tpu_custom_call.1} parent=5 // pred_region
        %s255 = ssub.s32 %s15, 1
        %s256 = sand.u32 %s42, 1
        %s257 = scalar_lea.sflag [#allocation4], %s256
        %s258 = sand.u32 %s42, 1
        %s259 = smul.addr %s258, 16
        %s260 = scalar_lea.vmem [#allocation3], %s259
        // Predicated region
        $region33: #{tpu_custom_call.1} parent=31 // pred_check
          %p261 = pneg %p55
        $region34: #{tpu_custom_call.1} parent=31 // pred_check_branch
          %263 = sbr.rel (%p261) target = $region36
        $region35: #{tpu_custom_call.1} parent=31 // pred_region
          %265 = dma.done %s257, 256
        $region36: #{tpu_custom_call.1} parent=31 // pred_fallthru
          _
        %s266 = sand.u32 %s20, 1
        %s267 = scalar_lea.sflag [#allocation6], %s266
        %s268 = sand.u32 %s70, 1
        %s269 = smul.addr %s268, 16
        %s270 = scalar_lea.vmem [#allocation5], %s269
        // Predicated region
        $region37: #{tpu_custom_call.1} parent=31 // pred_check
          %p271 = pneg %p83
        $region38: #{tpu_custom_call.1} parent=31 // pred_check_branch
          %273 = sbr.rel (%p271) target = $region40
        $region39: #{tpu_custom_call.1} parent=31 // pred_region
          %275 = dma.done %s267, 256
        $region40: #{tpu_custom_call.1} parent=31 // pred_fallthru
          _
        %s276 = sand.u32 %s20, 1
        %s277 = scalar_lea.sflag [#allocation6], %s276
        %s278 = sand.u32 %s98, 1
        %s279 = smul.addr %s278, 16
        %s280 = scalar_lea.vmem [#allocation7], %s279
        // Predicated region
        $region41: #{tpu_custom_call.1} parent=31 // pred_check
          %p281 = pneg %p111
        $region42: #{tpu_custom_call.1} parent=31 // pred_check_branch
          %283 = sbr.rel (%p281) target = $region44
        $region43: #{tpu_custom_call.1} parent=31 // pred_region
          %285 = dma.done %s277, 256
        $region44: #{tpu_custom_call.1} parent=31 // pred_fallthru
          _
        %s286 = sand.u32 %s42, 1
        %s287 = scalar_lea.sflag [#allocation4], %s286
        %s288 = sand.u32 %s42, 1
        %s289 = smul.addr %s288, 16
        %s290 = scalar_lea.vmem [#allocation3], %s289
        %p291 = pneg %p55
        %p292 = pneg %p52
        %s293 = sand.u32 %s20, 1
        %s294 = scalar_lea.sflag [#allocation6], %s293
        %s295 = sand.u32 %s70, 1
        %s296 = smul.addr %s295, 16
        %s297 = scalar_lea.vmem [#allocation5], %s296
        %p298 = pneg %p83
        %p299 = pneg %p80
        %s300 = sand.u32 %s20, 1
        %s301 = scalar_lea.sflag [#allocation6], %s300
        %s302 = sand.u32 %s98, 1
        %s303 = smul.addr %s302, 16
        %s304 = scalar_lea.vmem [#allocation7], %s303
        %p305 = pneg %p111
        %p306 = pneg %p108
        %p307 = pneg %p137
        %p308 = pneg %p134
        %s309 = sand.u32 %s124, 1
        %s310 = sand.u32 %s124, 1
        %s311 = smul.addr %s310, 16
        %s312 = scalar_lea.vmem [#allocation8], %s311
        %s313 = smul.u32 2, %s24
        %s314 = ssub.s32 3, %s313
        %p315 = scmp.lt.s32.totalorder %s314, 2
        %s316 = scalar_select %p315, %s314, 2
        %s317 = smul.u32 8, %s316
        %s318 = smul.u32 2, %s24
        %s319 = ssub.s32 3, %s318
        %p320 = scmp.lt.s32.totalorder %s319, 2
        %s321 = scalar_select %p320, %s319, 2
        %s322 = smul.u32 8, %s321
        %s323 = smul.u32 2, %s24
        %s324 = ssub.s32 3, %s323
        %p325 = scmp.lt.s32.totalorder %s324, 2
        %s326 = scalar_select %p325, %s324, 2
        %s327 = smul.u32 8, %s326
        %s328 = smul.u32 2, %s24
        %s329 = ssub.s32 3, %s328
        %p330 = scmp.lt.s32.totalorder %s329, 2
        %s331 = scalar_select %p330, %s329, 2
        %s332 = smul.u32 8, %s331
        %v333 = vld [vmem:[%s260] sm:$0xff]
        %v334 = vld [vmem:[%s260 + $0x8] sm:$0xff]
        %v335 = vld [vmem:[%s270] sm:$0xff]
        %v336 = vld [vmem:[%s270 + $0x8] sm:$0xff]
        %v337 = vld [vmem:[%s280] sm:$0xff]
        %v338 = vld [vmem:[%s280 + $0x8] sm:$0xff]
        %v339 = vmax.f32 %v333, 0.0
        %v340 = vmax.f32 %v334, 0.0
        %v341 = vmul.f32 %v333, %v335
        %v342 = vmul.f32 %v334, %v336
        %v343 = vsub.f32 %v339, %v341
        %v344 = vsub.f32 %v340, %v342
        %v345 = vand.u32 2147483647, %v333
        %v346 = vand.u32 2147483647, %v334
        %v347 = vsub.f32 0.0, %v345
        %v348 = vsub.f32 0.0, %v346
        %v349 = vmul.f32 %v347, 1.442695
        %v350 = vpow.pop %v349
        %v351 = vmul.f32 %v348, 1.442695
        %v352 = vpow.pop %v351
        %v353 = vadd.f32 %v350, 1.0
        %v354 = vlog2.pop %v353
        %v355 = vmul.f32 %v354, 0.6931472
        %v356 = vmul.f32 -0.5, %v350
        %v357 = vadd.f32 %v356, 1.0
        %v358 = vmul.f32 %v357, %v350
        %v359 = vand.u32 2147483647, %v350
        %vm360 = vcmp.lt.f32.partialorder %v359, 0.0004427343
        %v361 = vsel %vm360, %v358, %v355
        %v362 = vadd.f32 %v352, 1.0
        %v363 = vlog2.pop %v362
        %v364 = vmul.f32 %v363, 0.6931472
        %v365 = vmul.f32 -0.5, %v352
        %v366 = vadd.f32 %v365, 1.0
        %v367 = vmul.f32 %v366, %v352
        %v368 = vand.u32 2147483647, %v352
        %vm369 = vcmp.lt.f32.partialorder %v368, 0.0004427343
        %v370 = vsel %vm369, %v367, %v364
        %v371 = vadd.f32 %v343, %v361
        %v372 = vadd.f32 %v344, %v370
        %v373 = vmul.f32 %v371, %v337
        %v374 = vmul.f32 %v372, %v338
        %p375 = scmp.eq.s32.totalorder %s25, 0
        // Predicated region
        $region45: #{tpu_custom_call.1} parent=31 // pred_check
          %p376 = pneg %p375
        $region46: #{tpu_custom_call.1} parent=31 // pred_check_branch
          %378 = sbr.rel (%p376) target = $region48
        $region47: #{tpu_custom_call.1} parent=31 // pred_region
          %379 = vst [vmem:[#allocation2] sm:$0xff] 0.0
          %380 = vst [vmem:[#allocation2 + $0x8] sm:$0xff] 0.0
        $region48: #{tpu_custom_call.1} parent=31 // pred_fallthru
          _
        %p381 = scmp.ne.s32.totalorder %s25, 2
        // Predicated region
        $region49: #{tpu_custom_call.1} parent=31 // pred_check
          %p382 = pneg %p381
        $region50: #{tpu_custom_call.1} parent=31 // pred_check_branch
          %384 = sbr.rel (%p382) target = $region52
        $region51: #{tpu_custom_call.1} parent=31 // pred_region
          %v385 = vld [vmem:[#allocation2] sm:$0xff]
          %v386 = vld [vmem:[#allocation2 + $0x8] sm:$0xff]
          %v387 = vadd.f32 %v385, %v373
          %v388 = vadd.f32 %v386, %v374
          %389 = vst [vmem:[#allocation2] sm:$0xff] %v387
          %390 = vst [vmem:[#allocation2 + $0x8] sm:$0xff] %v388
        $region52: #{tpu_custom_call.1} parent=31 // pred_fallthru
          _
        %p391 = scmp.eq.s32.totalorder %s25, 2
        // Predicated region
        $region53: #{tpu_custom_call.1} parent=31 // pred_check
          %p392 = pneg %p391
        $region54: #{tpu_custom_call.1} parent=31 // pred_check_branch
          %394 = sbr.rel (%p392) target = $region56
        $region55: #{tpu_custom_call.1} parent=31 // pred_region
          %v395 = vlaneseq
          %v396 = vand.u32 %v395, 127
          %v397 = vadd.s32 %v396, 256
          %vm398 = vcmp.lt.s32.totalorder %v397, 320
          %v399 = vsel %vm398, 1, 0
          %vm400 = vcmp.eq.s32.totalorder %v399, 1
          %v401 = vsel %vm400, %v373, 0.0
          %v402 = vsel %vm400, %v374, 0.0
          %v403 = vld [vmem:[#allocation2] sm:$0xff]
          %v404 = vld [vmem:[#allocation2 + $0x8] sm:$0xff]
          %v405 = vadd.f32 %v403, %v401
          %v406 = vadd.f32 %v404, %v402
          %407 = vst [vmem:[#allocation2] sm:$0xff] %v405
          %408 = vst [vmem:[#allocation2 + $0x8] sm:$0xff] %v406
          %409 = vadd.xlane.f32.xlu0 %v405
          %v410 = vpop.xlane.xlu0 %409
          %411 = vadd.xlane.f32.xlu0 %v406
          %v412 = vpop.xlane.xlu0 %411
          %v413 = vmul.f32 %v410, 0.003125
          %v414 = vmul.f32 %v412, 0.003125
          %vm415 = vcmask 7168
          %416 = vst.msk [vmem:[%s312] sm:$0xff] %vm415, %v413
          %417 = vst.msk [vmem:[%s312 + $0x8] sm:$0xff] %vm415, %v414
        $region56: #{tpu_custom_call.1} parent=31 // pred_fallthru
          _
        %s418 = sand.u32 %s124, 1
        %s419 = sand.u32 %s124, 1
        %s420 = smul.addr %s419, 16
        %s421 = scalar_lea.vmem [#allocation8], %s420
        // Predicated region
        $region57: #{tpu_custom_call.1} parent=31 // pred_check
          %p422 = pneg %p134
        $region58: #{tpu_custom_call.1} parent=31 // pred_check_branch
          %424 = sbr.rel (%p422) target = $region60
        $region59: #{tpu_custom_call.1} parent=31 // pred_region
          %s425 = smul.u32 2, %s24
          %s426 = ssub.s32 3, %s425
          %p427 = scmp.lt.s32.totalorder %s426, 2
          %s428 = scalar_select %p427, %s426, 2
          %s429 = smul.u32 8, %s428
          %p430 = scmp.ne.s32.totalorder 0, %s429
          %s431 = smul.addr %s425, 8
          %s432 = scalar_lea.vmem %s3, %s431
          // Predicated region
          $region61: #{tpu_custom_call.1} parent=59 // pred_check
            %p433 = pneg %p430
          $region62: #{tpu_custom_call.1} parent=59 // pred_check_branch
            %435 = sbr.rel (%p433) target = $region64
          $region63: #{tpu_custom_call.1} parent=59 // pred_region
            // Predicated region
            $region65: #{tpu_custom_call.1} parent=63 // pred_check
              _
            $region66: #{tpu_custom_call.1} parent=63 // pred_check_branch
              %437 = sbr.rel (0) target = $region68
            $region67: #{tpu_custom_call.1} parent=63 // pred_region
              // Predicated region
              $region87: #{tpu_custom_call.1} parent=67 // pred_check
                _
              $region88: #{tpu_custom_call.1} parent=67 // pred_check_branch
                %489 = sbr.rel (0) target = $region90
              $region89: #{tpu_custom_call.1} parent=67 // pred_region
                %s490 = sshrl.u32 %s428, 1
                // While loop
                $region91: #{tpu_custom_call.1} parent=89 // loop_pre_header
                  _
                $region92: #{tpu_custom_call.1} parent=89 // loop_header
                  %s492 = sphi 0, %s494
                  %p493 = scmp.ge.s32.totalorder %s492, %s490
                  %s497 = sphi 0, %s506
                  %s498 = sphi %s421, %s509
                  %s499 = sphi %s432, %s510
                $region93: #{tpu_custom_call.1} parent=89 // loop_header_branch
                  %496 = sbr.rel (%p493) target = $region97
                $region94: #{tpu_custom_call.1} parent=89 // loop_body
                  %v500 = vld [vmem:[%s498] sm:$0xff]
                  %501 = vst [vmem:[%s499] sm:$0xff] %v500
                  %v502 = vld [vmem:[%s498 + $0x8] sm:$0xff]
                  %503 = vst [vmem:[%s499 + $0x8] sm:$0xff] %v502
                  %s504 = sadd.s32 1, %s497
                  %p505 = scmp.ge.s32.totalorder %s504, %s490
                  %s506 = scalar_select %p505, 0, %s504
                  %s507 = smul.u32 %s506, 16
                  %s508 = smul.u32 %s506, 16
                  %s509 = scalar_lea.vmem %s421, %s507 [#allocation8]
                  %s510 = scalar_lea.vmem %s432, %s508
                $region95: #{tpu_custom_call.1} parent=89 // loop_footer
                  %s494 = sadd.s32 %s492, 1
                $region96: #{tpu_custom_call.1} parent=89 // loop_footer_branch
                  %491 = sbr.rel target = $region92
                $region97: #{tpu_custom_call.1} parent=89 // loop_exit
                  _
                %s511 = sshrl.u32 %s428, 1
                %s512 = sand.u32 %s428, 1
                %s513 = smul.u32 %s511, 2
                %s514 = smul.u32 8, %s513
                %s515 = scalar_lea.vmem %s421, %s514 [#allocation8]
                %s516 = smul.u32 8, %s513
                %s517 = scalar_lea.vmem %s432, %s516
                // While loop
                $region98: #{tpu_custom_call.1} parent=89 // loop_pre_header
                  _
                $region99: #{tpu_custom_call.1} parent=89 // loop_header
                  %s519 = sphi 0, %s521
                  %p520 = scmp.ge.s32.totalorder %s519, %s512
                  %s524 = sphi 0, %s531
                  %s525 = sphi %s515, %s534
                  %s526 = sphi %s517, %s535
                $region100: #{tpu_custom_call.1} parent=89 // loop_header_branch
                  %523 = sbr.rel (%p520) target = $region104
                $region101: #{tpu_custom_call.1} parent=89 // loop_body
                  %v527 = vld [vmem:[%s525] sm:$0xff]
                  %528 = vst [vmem:[%s526] sm:$0xff] %v527
                  %s529 = sadd.s32 1, %s524
                  %p530 = scmp.ge.s32.totalorder %s529, %s512
                  %s531 = scalar_select %p530, 0, %s529
                  %s532 = smul.u32 %s531, 8
                  %s533 = smul.u32 %s531, 8
                  %s534 = scalar_lea.vmem %s515, %s532 [#allocation8]
                  %s535 = scalar_lea.vmem %s517, %s533
                $region102: #{tpu_custom_call.1} parent=89 // loop_footer
                  %s521 = sadd.s32 %s519, 1
                $region103: #{tpu_custom_call.1} parent=89 // loop_footer_branch
                  %518 = sbr.rel target = $region99
                $region104: #{tpu_custom_call.1} parent=89 // loop_exit
                  _
              $region90: #{tpu_custom_call.1} parent=67 // pred_fallthru
                _
              // Predicated region
              $region105: #{tpu_custom_call.1} parent=67 // pred_check
                _
              $region106: #{tpu_custom_call.1} parent=67 // pred_check_branch
                %537 = sbr.rel target = $region108
              $region107: #{tpu_custom_call.1} parent=67 // pred_region
                _
              $region108: #{tpu_custom_call.1} parent=67 // pred_fallthru
                _
            $region68: #{tpu_custom_call.1} parent=63 // pred_fallthru
              _
            // Predicated region
            $region69: #{tpu_custom_call.1} parent=63 // pred_check
              _
            $region70: #{tpu_custom_call.1} parent=63 // pred_check_branch
              %439 = sbr.rel target = $region72
            $region71: #{tpu_custom_call.1} parent=63 // pred_region
              %s441 = ssub.s32 256, 1
              %s442 = sshrl.u32 %s428, 1
              // While loop
              $region73: #{tpu_custom_call.1} parent=71 // loop_pre_header
                _
              $region74: #{tpu_custom_call.1} parent=71 // loop_header
                %s444 = sphi 0, %s446
                %p445 = scmp.ge.s32.totalorder %s444, %s442
                %s449 = sphi 0, %s458
                %s450 = sphi %s421, %s461
                %s451 = sphi %s432, %s462
              $region75: #{tpu_custom_call.1} parent=71 // loop_header_branch
                %448 = sbr.rel (%p445) target = $region79
              $region76: #{tpu_custom_call.1} parent=71 // loop_body
                %v452 = vld [vmem:[%s450] sm:%s441]
                %453 = vst [vmem:[%s451] sm:%s441] %v452
                %v454 = vld [vmem:[%s450 + $0x8] sm:%s441]
                %455 = vst [vmem:[%s451 + $0x8] sm:%s441] %v454
                %s456 = sadd.s32 1, %s449
                %p457 = scmp.ge.s32.totalorder %s456, %s442
                %s458 = scalar_select %p457, 0, %s456
                %s459 = smul.u32 %s458, 16
                %s460 = smul.u32 %s458, 16
                %s461 = scalar_lea.vmem %s421, %s459 [#allocation8]
                %s462 = scalar_lea.vmem %s432, %s460
              $region77: #{tpu_custom_call.1} parent=71 // loop_footer
                %s446 = sadd.s32 %s444, 1
              $region78: #{tpu_custom_call.1} parent=71 // loop_footer_branch
                %443 = sbr.rel target = $region74
              $region79: #{tpu_custom_call.1} parent=71 // loop_exit
                _
              %s463 = sshrl.u32 %s428, 1
              %s464 = sand.u32 %s428, 1
              %s465 = smul.u32 %s463, 2
              %s466 = smul.u32 8, %s465
              %s467 = scalar_lea.vmem %s421, %s466 [#allocation8]
              %s468 = smul.u32 8, %s465
              %s469 = scalar_lea.vmem %s432, %s468
              // While loop
              $region80: #{tpu_custom_call.1} parent=71 // loop_pre_header
                _
              $region81: #{tpu_custom_call.1} parent=71 // loop_header
                %s471 = sphi 0, %s473
                %p472 = scmp.ge.s32.totalorder %s471, %s464
                %s476 = sphi 0, %s483
                %s477 = sphi %s467, %s486
                %s478 = sphi %s469, %s487
              $region82: #{tpu_custom_call.1} parent=71 // loop_header_branch
                %475 = sbr.rel (%p472) target = $region86
              $region83: #{tpu_custom_call.1} parent=71 // loop_body
                %v479 = vld [vmem:[%s477] sm:%s441]
                %480 = vst [vmem:[%s478] sm:%s441] %v479
                %s481 = sadd.s32 1, %s476
                %p482 = scmp.ge.s32.totalorder %s481, %s464
                %s483 = scalar_select %p482, 0, %s481
                %s484 = smul.u32 %s483, 8
                %s485 = smul.u32 %s483, 8
                %s486 = scalar_lea.vmem %s467, %s484 [#allocation8]
                %s487 = scalar_lea.vmem %s469, %s485
              $region84: #{tpu_custom_call.1} parent=71 // loop_footer
                %s473 = sadd.s32 %s471, 1
              $region85: #{tpu_custom_call.1} parent=71 // loop_footer_branch
                %470 = sbr.rel target = $region81
              $region86: #{tpu_custom_call.1} parent=71 // loop_exit
                _
            $region72: #{tpu_custom_call.1} parent=63 // pred_fallthru
              _
          $region64: #{tpu_custom_call.1} parent=59 // pred_fallthru
            _
          %538 = vnop
        $region60: #{tpu_custom_call.1} parent=31 // pred_fallthru
          _
      $region32: #{tpu_custom_call.1} parent=5 // pred_fallthru
        _
      %p539 = scmp.le.s32.totalorder 2, %s15
      // Predicated region
      $region109: #{tpu_custom_call.1} parent=5 // pred_check
        %p540 = pneg %p539
      $region110: #{tpu_custom_call.1} parent=5 // pred_check_branch
        %542 = sbr.rel (%p540) target = $region112
      $region111: #{tpu_custom_call.1} parent=5 // pred_region
        %s543 = ssub.s32 %s15, 2
        // Predicated region
        $region113: #{tpu_custom_call.1} parent=111 // pred_check
          %p544 = pneg %p140
        $region114: #{tpu_custom_call.1} parent=111 // pred_check_branch
          %546 = sbr.rel (%p544) target = $region116
        $region115: #{tpu_custom_call.1} parent=111 // pred_region
          %s547 = sand.u32 %s125, 1
          %s548 = sand.u32 %s125, 1
          %s549 = smul.addr %s548, 16
          %s550 = scalar_lea.vmem [#allocation8], %s549
        $region116: #{tpu_custom_call.1} parent=111 // pred_fallthru
          _
      $region112: #{tpu_custom_call.1} parent=5 // pred_fallthru
        _
    $region6: #{tpu_custom_call.1} parent=1 // loop_footer
      %s19 = sadd.s32 1, %s15
    $region7: #{tpu_custom_call.1} parent=1 // loop_footer_branch
      %14 = sbr.rel target = $region3
    $region8: #{tpu_custom_call.1} parent=1 // loop_exit
      _
    %551 = vsyncpa [#allocation4], 1
    %s552 = scalar_lea.sflag [#allocation4], 1
    %553 = vsyncpa %s552, 1
    %554 = vsyncpa [#allocation6], 1
    %s555 = scalar_lea.sflag [#allocation6], 1
    %556 = vsyncpa %s555, 1

</llo_original>
